<compile_context>
chip_gen: v6e
topology: v6e:2x2x1
jax: 0.10.0
libtpu: 0.0.40
codegen_flags: <defaults>
</compile_context>

<pallas_src>
import functools

import numpy as np
import jax
import jax.numpy as jnp
from jax.experimental import pallas as pl
from jax.experimental.pallas import tpu as pltpu


def _round_up(x: int, m: int) -> int:
    return ((x + m - 1) // m) * m


def _ce_mean_kernel(target_ref, pred_ref, out_ref, *, n_actual, tile_n):
    """One grid step: accumulate sum of per-row CE for this row tile."""
    i = pl.program_id(0)

    @pl.when(i == 0)
    def _():
        out_ref[...] = jnp.zeros_like(out_ref)

    # Native-dtype logits were DMA'd; upcast to f32 in-register for the math.
    pred = pred_ref[...].astype(jnp.float32)            # (tile_n, C)
    tgt = target_ref[...]                               # (tile_n, 1) int32
    tn, C = pred.shape

    col_iota = jax.lax.broadcasted_iota(jnp.int32, (tn, C), 1)
    onehot = (col_iota == tgt).astype(jnp.float32)      # (tile_n, C)

    # Numerically stable log-sum-exp per row (one max + one sum-of-exp per row).
    row_max = jnp.max(pred, axis=1, keepdims=True)                      # (tn, 1)
    lse = row_max + jnp.log(jnp.sum(jnp.exp(pred - row_max),
                                    axis=1, keepdims=True))             # (tn, 1)
    picked = jnp.sum(pred * onehot, axis=1, keepdims=True)              # (tn, 1)
    ce = lse - picked                                                   # (tn, 1)

    # Mask padded tail rows (grid may overshoot the true N).
    row_iota = jax.lax.broadcasted_iota(jnp.int32, (tn, 1), 0)
    valid = ((i * tile_n + row_iota) < n_actual).astype(jnp.float32)
    out_ref[...] = out_ref[...] + jnp.sum(ce * valid)

    @pl.when(i == pl.num_programs(0) - 1)
    def _():
        out_ref[...] = out_ref[...] / jnp.float32(n_actual)


def traffic_loss(pred, target, distance_matrix=None, station_matrix=None,
                 lambda_dist: float = 1.0, lambda_stat: float = 1.0,
                 tile_n: int = 256):
    """Returns avg_ce_loss -- exactly what TrafficLoss.forward returns.

    distance_matrix / station_matrix / lambda_* are accepted for interface
    parity with the PyTorch module but are unused: the module computes the
    dist/stat terms and then discards them, returning only avg_ce_loss.
    """
    N, C = pred.shape
    tile_n = int(min(tile_n, _round_up(N, 8)))
    n_pad = _round_up(N, tile_n)
    num_tiles = n_pad // tile_n
    if n_pad != N:
        pred = jnp.pad(pred, ((0, n_pad - N), (0, 0)))
        target = jnp.pad(target, (0, n_pad - N))
    target2d = target.astype(jnp.int32).reshape(n_pad, 1)

    kernel = functools.partial(_ce_mean_kernel, n_actual=N, tile_n=tile_n)

    out = pl.pallas_call(
        kernel,
        out_shape=jax.ShapeDtypeStruct((1, 1), jnp.float32),
        grid_spec=pltpu.PrefetchScalarGridSpec(
            num_scalar_prefetch=0,
            grid=(num_tiles,),
            in_specs=[
                pl.BlockSpec((tile_n, 1), lambda i: (i, 0)),   # target indices
                pl.BlockSpec((tile_n, C), lambda i: (i, 0)),   # logits (native dtype)
            ],
            out_specs=pl.BlockSpec((1, 1), lambda i: (0, 0)),  # resident accumulator
        ),
        compiler_params=pltpu.CompilerParams(
            dimension_semantics=("arbitrary",),      # grid axis is a reduction
            vmem_limit_bytes=32 * 1024 * 1024,       # explicit cap (v7x-safe)
        ),
    )(target2d, pred)
    return out[0, 0]


def traffic_loss_ref(pred, target):
    """Pure-JAX reference for mean cross-entropy (what the module returns)."""
    logits = pred.astype(jnp.float32)
    lse = jax.nn.logsumexp(logits, axis=1)
    picked = jnp.take_along_axis(logits, target[:, None].astype(jnp.int32),
                                 axis=1)[:, 0]
    return jnp.mean(lse - picked)


if __name__ == "__main__":
    key = jax.random.PRNGKey(0)
    k1, k2, k3, k4 = jax.random.split(key, 4)

    # Small shapes; N is NOT a multiple of the tile so tail masking is exercised.
    N, C = 520, 128
    pred = jax.random.normal(k1, (N, C), dtype=jnp.float32)
    target = jax.random.randint(k2, (N,), 0, C, dtype=jnp.int32)
    # Synthetic distance / station matrices (interface parity only; unused on
    # the return path, exactly like the PyTorch module).
    distance_matrix = jax.random.uniform(k3, (C, C), dtype=jnp.float32,
                                         minval=0.0, maxval=10.0)
    distance_matrix = distance_matrix * (1.0 - jnp.eye(C, dtype=jnp.float32))
    station_matrix = jax.random.uniform(k4, (C, C), dtype=jnp.float32,
                                        minval=0.0, maxval=5.0)
    station_matrix = station_matrix * (1.0 - jnp.eye(C, dtype=jnp.float32))

    loss = traffic_loss(pred, target, distance_matrix, station_matrix)
    loss = jax.block_until_ready(loss)

    ref = jax.block_until_ready(traffic_loss_ref(pred, target))
    np.testing.assert_allclose(np.asarray(loss), np.asarray(ref),
                               rtol=1e-5, atol=1e-5)
    print("KERNEL_OK")
</pallas_src>

<mosaic_0001>
module attributes {stable_mosaic.version = 11 : i64} {
  func.func @_ce_mean_kernel(%arg0: i32, %arg1: memref<256x1xi32, #tpu.memory_space<vmem>>, %arg2: memref<256x128xf32, #tpu.memory_space<vmem>>, %arg3: memref<1x1xf32, #tpu.memory_space<vmem>>) attributes {dimension_semantics = [#tpu.dimension_semantics<arbitrary>], iteration_bounds = array<i64: 3>, scalar_prefetch = 0 : i64, scratch_operands = 0 : i64, tpu.core_type = #tpu.core_type<tc>, window_params = [{transform_indices = @transform_0, window_bounds = array<i64: 256, 1>}, {transform_indices = @transform_1, window_bounds = array<i64: 256, 128>}, {pipeline_mode = #tpu.pipeline_mode<synchronous>, transform_indices = @transform_2, window_bounds = array<i64: 1, 1>}]} {
    %c0_i32 = arith.constant 0 : i32
    %0 = arith.cmpi eq, %arg0, %c0_i32 : i32
    %1 = arith.extui %0 : i1 to i32
    %c0_i32_0 = arith.constant 0 : i32
    %2 = arith.cmpi ne, %1, %c0_i32_0 : i32
    scf.if %2 {
      %cst_12 = arith.constant 0.000000e+00 : f32
      %43 = vector.broadcast %cst_12 : f32 to vector<1x1xf32>
      %c0_13 = arith.constant 0 : index
      %c0_14 = arith.constant 0 : index
      %44 = vector.load %arg3[%c0_13, %c0_14] : memref<1x1xf32, #tpu.memory_space<vmem>>, vector<1x1xf32>
      tpu.vector_store %arg3[%c0_13, %c0_14], %43 {strides = array<i32>} : memref<1x1xf32, #tpu.memory_space<vmem>>, vector<1x1xf32>,
    } else {
    }
    %c0 = arith.constant 0 : index
    %c0_1 = arith.constant 0 : index
    %3 = vector.load %arg2[%c0, %c0_1] : memref<256x128xf32, #tpu.memory_space<vmem>>, vector<256x128xf32>
    %c0_2 = arith.constant 0 : index
    %c0_3 = arith.constant 0 : index
    %4 = vector.load %arg1[%c0_2, %c0_3] : memref<256x1xi32, #tpu.memory_space<vmem>>, vector<256x1xi32>
    %5 = tpu.iota {dimensions = array<i32: 1>} : vector<256x128xi32>
    %6 = vector.broadcast %4 : vector<256x1xi32> to vector<256x128xi32>
    %7 = arith.cmpi eq, %5, %6 : vector<256x128xi32>
    %8 = arith.extui %7 : vector<256x128xi1> to vector<256x128xi32>
    %9 = arith.sitofp %8 : vector<256x128xi32> to vector<256x128xf32>
    %cst = arith.constant dense<0xFF800000> : vector<256xf32>
    %10 = vector.multi_reduction <maximumf>, %3, %cst [1] : vector<256x128xf32> to vector<256xf32>
    %11 = vector.shape_cast %10 : vector<256xf32> to vector<256x1xf32>
    %12 = vector.broadcast %11 : vector<256x1xf32> to vector<256x128xf32>
    %13 = arith.subf %3, %12 : vector<256x128xf32>
    %14 = math.exp %13 : vector<256x128xf32>
    %cst_4 = arith.constant dense<0.000000e+00> : vector<256xf32>
    %15 = vector.multi_reduction <add>, %14, %cst_4 [1] : vector<256x128xf32> to vector<256xf32>
    %16 = vector.shape_cast %15 : vector<256xf32> to vector<256x1xf32>
    %17 = math.log %16 : vector<256x1xf32>
    %18 = arith.addf %11, %17 : vector<256x1xf32>
    %19 = arith.mulf %3, %9 : vector<256x128xf32>
    %cst_5 = arith.constant dense<0.000000e+00> : vector<256xf32>
    %20 = vector.multi_reduction <add>, %19, %cst_5 [1] : vector<256x128xf32> to vector<256xf32>
    %21 = vector.shape_cast %20 : vector<256xf32> to vector<256x1xf32>
    %22 = arith.subf %18, %21 : vector<256x1xf32>
    %23 = tpu.iota {dimensions = array<i32: 0>} : vector<256x1xi32>
    %c256_i32 = arith.constant 256 : i32
    %24 = arith.muli %arg0, %c256_i32 : i32
    %25 = vector.broadcast %24 : i32 to vector<256x1xi32>
    %26 = arith.addi %25, %23 : vector<256x1xi32>
    %c520_i32 = arith.constant 520 : i32
    %27 = vector.broadcast %c520_i32 : i32 to vector<256x1xi32>
    %28 = arith.cmpi slt, %26, %27 : vector<256x1xi32>
    %29 = arith.extui %28 : vector<256x1xi1> to vector<256x1xi32>
    %30 = arith.sitofp %29 : vector<256x1xi32> to vector<256x1xf32>
    %c0_6 = arith.constant 0 : index
    %c0_7 = arith.constant 0 : index
    %31 = vector.load %arg3[%c0_6, %c0_7] : memref<1x1xf32, #tpu.memory_space<vmem>>, vector<1x1xf32>
    %32 = arith.mulf %22, %30 : vector<256x1xf32>
    %33 = vector.shape_cast %32 : vector<256x1xf32> to vector<1x256x1xf32>
    %cst_8 = arith.constant dense<0.000000e+00> : vector<1xf32>
    %34 = vector.multi_reduction <add>, %33, %cst_8 [1, 2] : vector<1x256x1xf32> to vector<1xf32>
    %35 = vector.shape_cast %34 : vector<1xf32> to vector<1x1x1xf32>
    %36 = vector.extract %35[0, 0, 0] : f32 from vector<1x1x1xf32>
    %37 = vector.broadcast %36 : f32 to vector<1x1xf32>
    %38 = arith.addf %31, %37 : vector<1x1xf32>
    %c0_9 = arith.constant 0 : index
    %c0_10 = arith.constant 0 : index
    %39 = vector.load %arg3[%c0_9, %c0_10] : memref<1x1xf32, #tpu.memory_space<vmem>>, vector<1x1xf32>
    tpu.vector_store %arg3[%c0_9, %c0_10], %38 {strides = array<i32>} : memref<1x1xf32, #tpu.memory_space<vmem>>, vector<1x1xf32>,
    %c2_i32 = arith.constant 2 : i32
    %40 = arith.cmpi eq, %arg0, %c2_i32 : i32
    %41 = arith.extui %40 : i1 to i32
    %c0_i32_11 = arith.constant 0 : i32
    %42 = arith.cmpi ne, %41, %c0_i32_11 : i32
    scf.if %42 {
      %c0_12 = arith.constant 0 : index
      %c0_13 = arith.constant 0 : index
      %43 = vector.load %arg3[%c0_12, %c0_13] : memref<1x1xf32, #tpu.memory_space<vmem>>, vector<1x1xf32>
      %cst_14 = arith.constant 5.200000e+02 : f32
      %44 = vector.broadcast %cst_14 : f32 to vector<1x1xf32>
      %45 = arith.divf %43, %44 : vector<1x1xf32>
      %c0_15 = arith.constant 0 : index
      %c0_16 = arith.constant 0 : index
      %46 = vector.load %arg3[%c0_15, %c0_16] : memref<1x1xf32, #tpu.memory_space<vmem>>, vector<1x1xf32>
      tpu.vector_store %arg3[%c0_15, %c0_16], %45 {strides = array<i32>} : memref<1x1xf32, #tpu.memory_space<vmem>>, vector<1x1xf32>,
    } else {
    }
    return
  }
  func.func @transform_0(%arg0: i32) -> (i32, i32) {
    %c0_i32 = arith.constant 0 : i32
    %c0_i32_0 = arith.constant 0 : i32
    return %arg0, %c0_i32 : i32, i32
  }
  func.func @transform_1(%arg0: i32) -> (i32, i32) {
    %c0_i32 = arith.constant 0 : i32
    %c0_i32_0 = arith.constant 0 : i32
    return %arg0, %c0_i32 : i32, i32
  }
  func.func @transform_2(%arg0: i32) -> (i32, i32) {
    %c0_i32 = arith.constant 0 : i32
    %c0_i32_0 = arith.constant 0 : i32
    %c0_i32_1 = arith.constant 0 : i32
    return %c0_i32, %c0_i32_0 : i32, i32
  }
}

</mosaic_0001>

<llo_original>
// kernel: tpu_custom_call.1
$region0: #{tpu_custom_call.1}
  #allocation0 [shape = 'u32[]', space=smem, size = 0x4, offset = 0x4, fixed_abs, tag = 'smem constant byte address 0x4 - core index']
  #allocation1 [shape = 'u32[144,128]{1,0:T(1,128)}', space=vmem, size = 0x12000, scoped, tag = 'internal scratch']
  %s0 = inlined_call_operand.vmem [shape: s32[768,1], index: 0, kind: input, shape index: {}]
  %s1 = inlined_call_operand.vmem [shape: f32[768,128], index: 1, kind: input, shape index: {}]
  %s2 = inlined_call_operand.hbm [shape: f32[1,1], index: 2, kind: output, shape index: {}]
  %s3 = sld [smem:[#allocation0]]
  $region49: #{tpu_custom_call.1} parent=0
    _
  %s5 = ssub.s32 1, %s3
  %s6 = scalar_select 0, %s5, %s3
  $region1: #{tpu_custom_call.1} parent=0
    #allocation2 [shape = 'u8[512]{0}', space=vmem, size = 0x400, scoped, tag = 'output window, operand 0, single buffered']
    #allocation3 [shape = 's32[2]{0}', space=sflag, size = 0x8, scoped, tag = 'scoped memory for tpu_custom_call.1']
    %7 = vsyncpa [#allocation3], 0
    loop: start=0, step=1, limit=5
    $region2: #{tpu_custom_call.1} parent=1 // loop_pre_header
      _
    $region3: #{tpu_custom_call.1} parent=1 // loop_header
      %s9 = sphi 0, %s13
      %p10 = scmp.ge.s32.totalorder %s9, 5
      %s19 = sphi 0, %s21
      %s22 = sphi 0, %s19
      %s23 = sphi 0, %s22
      %s39 = sphi 0, %s23
      %s45 = sphi 0, %s47
      %s48 = sphi 0, %s45
      %s49 = sphi 0, %s48
      %s65 = sphi 0, %s49
      %s69 = sphi 0, %s69
      %s71 = sphi 0, %s69
      %s72 = sphi 0, %s71
      %s86 = sphi 0, %s72
    $region4: #{tpu_custom_call.1} parent=1 // loop_header_branch
      %12 = sbr.rel (%p10) target = $region8
    $region5: #{tpu_custom_call.1} parent=1 // loop_body
      %s14 = ssub.s32 %s9, 1
      %s15 = ssub.s32 %s9, 2
      %s16 = sadd.s32 %s9, 1
      %s17 = ssub.s32 %s9, %s16
      %p18 = scmp.eq.s32.totalorder %s17, 0
      %s20 = sadd.s32 %s19, 1
      %s21 = scalar_select %p18, %s19, %s20
      %p24 = pneg %p18
      %p25 = scmp.eq.s32.totalorder %s9, 2
      %p26 = por %p24, %p25
      %p27 = scmp.ne.s32.totalorder %s19, %s22
      %p28 = scmp.eq.s32.totalorder %s9, 0
      %p29 = por %p27, %p28
      %p30 = scmp.ne.s32.totalorder %s19, %s22
      %p31 = scmp.eq.s32.totalorder %s14, 2
      %p32 = por %p30, %p31
      %p33 = scmp.ne.s32.totalorder %s22, %s23
      %p34 = scmp.eq.s32.totalorder %s14, 0
      %p35 = por %p33, %p34
      %p36 = scmp.ne.s32.totalorder %s22, %s23
      %p37 = scmp.eq.s32.totalorder %s15, 2
      %p38 = por %p36, %p37
      %p40 = scmp.ne.s32.totalorder %s23, %s39
      %p41 = scmp.eq.s32.totalorder %s15, 0
      %p42 = por %p40, %p41
      %s43 = ssub.s32 %s9, %s16
      %p44 = scmp.eq.s32.totalorder %s43, 0
      %s46 = sadd.s32 %s45, 1
      %s47 = scalar_select %p44, %s45, %s46
      %p50 = pneg %p44
      %p51 = scmp.eq.s32.totalorder %s9, 2
      %p52 = por %p50, %p51
      %p53 = scmp.ne.s32.totalorder %s45, %s48
      %p54 = scmp.eq.s32.totalorder %s9, 0
      %p55 = por %p53, %p54
      %p56 = scmp.ne.s32.totalorder %s45, %s48
      %p57 = scmp.eq.s32.totalorder %s14, 2
      %p58 = por %p56, %p57
      %p59 = scmp.ne.s32.totalorder %s48, %s49
      %p60 = scmp.eq.s32.totalorder %s14, 0
      %p61 = por %p59, %p60
      %p62 = scmp.ne.s32.totalorder %s48, %s49
      %p63 = scmp.eq.s32.totalorder %s15, 2
      %p64 = por %p62, %p63
      %p66 = scmp.ne.s32.totalorder %s49, %s65
      %p67 = scmp.eq.s32.totalorder %s15, 0
      %p68 = por %p66, %p67
      %s70 = sadd.s32 %s69, 1
      %p73 = scmp.eq.s32.totalorder %s9, 2
      %p74 = scmp.ne.s32.totalorder %s69, %s71
      %p75 = scmp.eq.s32.totalorder %s9, 0
      %p76 = por %p74, %p75
      %p77 = scmp.ne.s32.totalorder %s69, %s71
      %p78 = scmp.eq.s32.totalorder %s14, 2
      %p79 = por %p77, %p78
      %p80 = scmp.ne.s32.totalorder %s71, %s72
      %p81 = scmp.eq.s32.totalorder %s14, 0
      %p82 = por %p80, %p81
      %p83 = scmp.ne.s32.totalorder %s71, %s72
      %p84 = scmp.eq.s32.totalorder %s15, 2
      %p85 = por %p83, %p84
      %p87 = scmp.ne.s32.totalorder %s72, %s86
      %p88 = scmp.eq.s32.totalorder %s15, 0
      %p89 = por %p87, %p88
      %p90 = scmp.le.s32.totalorder 1, %s9
      %p91 = scmp.lt.s32.totalorder %s9, 4
      %p92 = pnand %p90, %p91
      %p93 = pneg %p92
      // Predicated region
      $region9: #{tpu_custom_call.1} parent=5 // pred_check
        _
      $region10: #{tpu_custom_call.1} parent=5 // pred_check_branch
        %95 = sbr.rel (%p92) target = $region12
      $region11: #{tpu_custom_call.1} parent=5 // pred_region
        %s96 = ssub.s32 %s9, 1
      $region12: #{tpu_custom_call.1} parent=5 // pred_fallthru
        _
      %p97 = scmp.lt.s32.totalorder %s9, 3
      // Predicated region
      $region13: #{tpu_custom_call.1} parent=5 // pred_check
        %p98 = pneg %p97
      $region14: #{tpu_custom_call.1} parent=5 // pred_check_branch
        %100 = sbr.rel (%p98) target = $region16
      $region15: #{tpu_custom_call.1} parent=5 // pred_region
        // Predicated region
        $region17: #{tpu_custom_call.1} parent=15 // pred_check
          %p101 = pneg %p29
        $region18: #{tpu_custom_call.1} parent=15 // pred_check_branch
          %103 = sbr.rel (%p101) target = $region20
        $region19: #{tpu_custom_call.1} parent=15 // pred_region
          %s104 = smul.u32 32, %s9
          %p105 = scmp.lt.s32.totalorder %s104, 95
          %s106 = scalar_select %p105, %s104, 95
          %s107 = smul.addr %s106, 8
          %s108 = scalar_lea.vmem %s0, %s107
          %s109 = smul.u32 32, %s9
        $region20: #{tpu_custom_call.1} parent=15 // pred_fallthru
          _
        // Predicated region
        $region21: #{tpu_custom_call.1} parent=15 // pred_check
          %p110 = pneg %p55
        $region22: #{tpu_custom_call.1} parent=15 // pred_check_branch
          %112 = sbr.rel (%p110) target = $region24
        $region23: #{tpu_custom_call.1} parent=15 // pred_region
          %s113 = smul.u32 32, %s9
          %p114 = scmp.lt.s32.totalorder %s113, 95
          %s115 = scalar_select %p114, %s113, 95
          %s116 = smul.addr %s115, 8
          %s117 = scalar_lea.vmem %s1, %s116
          %s118 = smul.u32 32, %s9
        $region24: #{tpu_custom_call.1} parent=15 // pred_fallthru
          _
      $region16: #{tpu_custom_call.1} parent=5 // pred_fallthru
        _
      %p119 = scmp.le.s32.totalorder 1, %s9
      %p120 = scmp.lt.s32.totalorder %s9, 4
      %p121 = pnand %p119, %p120
      %p122 = pneg %p121
      // Predicated region
      $region25: #{tpu_custom_call.1} parent=5 // pred_check
        _
      $region26: #{tpu_custom_call.1} parent=5 // pred_check_branch
        %124 = sbr.rel (%p121) target = $region28
      $region27: #{tpu_custom_call.1} parent=5 // pred_region
        %s125 = ssub.s32 %s9, 1
        %s126 = smul.u32 32, %s14
        %p127 = scmp.lt.s32.totalorder %s126, 95
        %s128 = scalar_select %p127, %s126, 95
        %s129 = smul.addr %s128, 8
        %s130 = scalar_lea.vmem %s0, %s129
        %p131 = pneg %p35
        %p132 = pneg %p32
        %s133 = smul.u32 32, %s14
        %p134 = scmp.lt.s32.totalorder %s133, 95
        %s135 = scalar_select %p134, %s133, 95
        %s136 = smul.addr %s135, 8
        %s137 = scalar_lea.vmem %s1, %s136
        %p138 = pneg %p61
        %p139 = pneg %p58
        %p140 = pneg %p82
        %p141 = pneg %p79
        %s142 = smul.u32 32, %s14
        %p143 = scmp.lt.s32.totalorder %s142, 95
        %s144 = scalar_select %p143, %s142, 95
        %s145 = smul.addr %s144, 8
        %s146 = scalar_lea.vmem %s0, %s145
        %s147 = smul.u32 32, %s14
        %s148 = smul.u32 32, %s14
        %p149 = scmp.lt.s32.totalorder %s148, 95
        %s150 = scalar_select %p149, %s148, 95
        %s151 = smul.addr %s150, 8
        %s152 = scalar_lea.vmem %s1, %s151
        %s153 = smul.u32 32, %s14
        %p154 = scmp.eq.s32.totalorder %s14, 0
        // Predicated region
        $region29: #{tpu_custom_call.1} parent=27 // pred_check
          %p155 = pneg %p154
        $region30: #{tpu_custom_call.1} parent=27 // pred_check_branch
          %157 = sbr.rel (%p155) target = $region32
        $region31: #{tpu_custom_call.1} parent=27 // pred_region
          %vm158 = vcmask 0
          %159 = vst.msk [vmem:[#allocation2] sm:$0x1] %vm158, 0.0
        $region32: #{tpu_custom_call.1} parent=27 // pred_fallthru
          _
        %v160 = vld [vmem:[%s152] sm:$0xff]
        %v161 = vld [vmem:[%s152 + $0x8] sm:$0xff]
        %v162 = vld [vmem:[%s152 + $0x10] sm:$0xff]
        %v163 = vld [vmem:[%s152 + $0x18] sm:$0xff]
        %v164 = vld [vmem:[%s152 + $0x20] sm:$0xff]
        %v165 = vld [vmem:[%s152 + $0x28] sm:$0xff]
        %v166 = vld [vmem:[%s152 + $0x30] sm:$0xff]
        %v167 = vld [vmem:[%s152 + $0x38] sm:$0xff]
        %v168 = vld [vmem:[%s152 + $0x40] sm:$0xff]
        %v169 = vld [vmem:[%s152 + $0x48] sm:$0xff]
        %v170 = vld [vmem:[%s152 + $0x50] sm:$0xff]
        %v171 = vld [vmem:[%s152 + $0x58] sm:$0xff]
        %v172 = vld [vmem:[%s152 + $0x60] sm:$0xff]
        %v173 = vld [vmem:[%s152 + $0x68] sm:$0xff]
        %v174 = vld [vmem:[%s152 + $0x70] sm:$0xff]
        %v175 = vld [vmem:[%s152 + $0x78] sm:$0xff]
        %v176 = vld [vmem:[%s152 + $0x80] sm:$0xff]
        %v177 = vld [vmem:[%s152 + $0x88] sm:$0xff]
        %v178 = vld [vmem:[%s152 + $0x90] sm:$0xff]
        %v179 = vld [vmem:[%s152 + $0x98] sm:$0xff]
        %v180 = vld [vmem:[%s152 + $0xa0] sm:$0xff]
        %v181 = vld [vmem:[%s152 + $0xa8] sm:$0xff]
        %v182 = vld [vmem:[%s152 + $0xb0] sm:$0xff]
        %v183 = vld [vmem:[%s152 + $0xb8] sm:$0xff]
        %v184 = vld [vmem:[%s152 + $0xc0] sm:$0xff]
        %v185 = vld [vmem:[%s152 + $0xc8] sm:$0xff]
        %v186 = vld [vmem:[%s152 + $0xd0] sm:$0xff]
        %v187 = vld [vmem:[%s152 + $0xd8] sm:$0xff]
        %v188 = vld [vmem:[%s152 + $0xe0] sm:$0xff]
        %v189 = vld [vmem:[%s152 + $0xe8] sm:$0xff]
        %v190 = vld [vmem:[%s152 + $0xf0] sm:$0xff]
        %v191 = vld [vmem:[%s152 + $0xf8] sm:$0xff]
        %v192 = vld [vmem:[%s146] sm:$0xff]
        %v193 = vld [vmem:[%s146 + $0x8] sm:$0xff]
        %v194 = vld [vmem:[%s146 + $0x10] sm:$0xff]
        %v195 = vld [vmem:[%s146 + $0x18] sm:$0xff]
        %v196 = vld [vmem:[%s146 + $0x20] sm:$0xff]
        %v197 = vld [vmem:[%s146 + $0x28] sm:$0xff]
        %v198 = vld [vmem:[%s146 + $0x30] sm:$0xff]
        %v199 = vld [vmem:[%s146 + $0x38] sm:$0xff]
        %v200 = vld [vmem:[%s146 + $0x40] sm:$0xff]
        %v201 = vld [vmem:[%s146 + $0x48] sm:$0xff]
        %v202 = vld [vmem:[%s146 + $0x50] sm:$0xff]
        %v203 = vld [vmem:[%s146 + $0x58] sm:$0xff]
        %v204 = vld [vmem:[%s146 + $0x60] sm:$0xff]
        %v205 = vld [vmem:[%s146 + $0x68] sm:$0xff]
        %v206 = vld [vmem:[%s146 + $0x70] sm:$0xff]
        %v207 = vld [vmem:[%s146 + $0x78] sm:$0xff]
        %v208 = vld [vmem:[%s146 + $0x80] sm:$0xff]
        %v209 = vld [vmem:[%s146 + $0x88] sm:$0xff]
        %v210 = vld [vmem:[%s146 + $0x90] sm:$0xff]
        %v211 = vld [vmem:[%s146 + $0x98] sm:$0xff]
        %v212 = vld [vmem:[%s146 + $0xa0] sm:$0xff]
        %v213 = vld [vmem:[%s146 + $0xa8] sm:$0xff]
        %v214 = vld [vmem:[%s146 + $0xb0] sm:$0xff]
        %v215 = vld [vmem:[%s146 + $0xb8] sm:$0xff]
        %v216 = vld [vmem:[%s146 + $0xc0] sm:$0xff]
        %v217 = vld [vmem:[%s146 + $0xc8] sm:$0xff]
        %v218 = vld [vmem:[%s146 + $0xd0] sm:$0xff]
        %v219 = vld [vmem:[%s146 + $0xd8] sm:$0xff]
        %v220 = vld [vmem:[%s146 + $0xe0] sm:$0xff]
        %v221 = vld [vmem:[%s146 + $0xe8] sm:$0xff]
        %v222 = vld [vmem:[%s146 + $0xf0] sm:$0xff]
        %v223 = vld [vmem:[%s146 + $0xf8] sm:$0xff]
        %v224 = vlaneseq
        %v225 = vand.u32 %v224, 127
        %226 = vset.pattern.permute.xlu0 0
        %227 = vperm.xlu0 %226, %v192
        %v228 = vpop.permute.xlu0 %227
        %229 = vset.pattern.permute.xlu0 0
        %230 = vperm.xlu0 %229, %v193
        %v231 = vpop.permute.xlu0 %230
        %232 = vset.pattern.permute.xlu0 0
        %233 = vperm.xlu0 %232, %v194
        %v234 = vpop.permute.xlu0 %233
        %235 = vset.pattern.permute.xlu0 0
        %236 = vperm.xlu0 %235, %v195
        %v237 = vpop.permute.xlu0 %236
        %238 = vset.pattern.permute.xlu0 0
        %239 = vperm.xlu0 %238, %v196
        %v240 = vpop.permute.xlu0 %239
        %241 = vset.pattern.permute.xlu0 0
        %242 = vperm.xlu0 %241, %v197
        %v243 = vpop.permute.xlu0 %242
        %244 = vset.pattern.permute.xlu0 0
        %245 = vperm.xlu0 %244, %v198
        %v246 = vpop.permute.xlu0 %245
        %247 = vset.pattern.permute.xlu0 0
        %248 = vperm.xlu0 %247, %v199
        %v249 = vpop.permute.xlu0 %248
        %250 = vset.pattern.permute.xlu0 0
        %251 = vperm.xlu0 %250, %v200
        %v252 = vpop.permute.xlu0 %251
        %253 = vset.pattern.permute.xlu0 0
        %254 = vperm.xlu0 %253, %v201
        %v255 = vpop.permute.xlu0 %254
        %256 = vset.pattern.permute.xlu0 0
        %257 = vperm.xlu0 %256, %v202
        %v258 = vpop.permute.xlu0 %257
        %259 = vset.pattern.permute.xlu0 0
        %260 = vperm.xlu0 %259, %v203
        %v261 = vpop.permute.xlu0 %260
        %262 = vset.pattern.permute.xlu0 0
        %263 = vperm.xlu0 %262, %v204
        %v264 = vpop.permute.xlu0 %263
        %265 = vset.pattern.permute.xlu0 0
        %266 = vperm.xlu0 %265, %v205
        %v267 = vpop.permute.xlu0 %266
        %268 = vset.pattern.permute.xlu0 0
        %269 = vperm.xlu0 %268, %v206
        %v270 = vpop.permute.xlu0 %269
        %271 = vset.pattern.permute.xlu0 0
        %272 = vperm.xlu0 %271, %v207
        %v273 = vpop.permute.xlu0 %272
        %274 = vset.pattern.permute.xlu0 0
        %275 = vperm.xlu0 %274, %v208
        %v276 = vpop.permute.xlu0 %275
        %277 = vset.pattern.permute.xlu0 0
        %278 = vperm.xlu0 %277, %v209
        %v279 = vpop.permute.xlu0 %278
        %280 = vset.pattern.permute.xlu0 0
        %281 = vperm.xlu0 %280, %v210
        %v282 = vpop.permute.xlu0 %281
        %283 = vset.pattern.permute.xlu0 0
        %284 = vperm.xlu0 %283, %v211
        %v285 = vpop.permute.xlu0 %284
        %286 = vset.pattern.permute.xlu0 0
        %287 = vperm.xlu0 %286, %v212
        %v288 = vpop.permute.xlu0 %287
        %289 = vset.pattern.permute.xlu0 0
        %290 = vperm.xlu0 %289, %v213
        %v291 = vpop.permute.xlu0 %290
        %292 = vset.pattern.permute.xlu0 0
        %293 = vperm.xlu0 %292, %v214
        %v294 = vpop.permute.xlu0 %293
        %295 = vset.pattern.permute.xlu0 0
        %296 = vperm.xlu0 %295, %v215
        %v297 = vpop.permute.xlu0 %296
        %298 = vset.pattern.permute.xlu0 0
        %299 = vperm.xlu0 %298, %v216
        %v300 = vpop.permute.xlu0 %299
        %301 = vset.pattern.permute.xlu0 0
        %302 = vperm.xlu0 %301, %v217
        %v303 = vpop.permute.xlu0 %302
        %304 = vset.pattern.permute.xlu0 0
        %305 = vperm.xlu0 %304, %v218
        %v306 = vpop.permute.xlu0 %305
        %307 = vset.pattern.permute.xlu0 0
        %308 = vperm.xlu0 %307, %v219
        %v309 = vpop.permute.xlu0 %308
        %310 = vset.pattern.permute.xlu0 0
        %311 = vperm.xlu0 %310, %v220
        %v312 = vpop.permute.xlu0 %311
        %313 = vset.pattern.permute.xlu0 0
        %314 = vperm.xlu0 %313, %v221
        %v315 = vpop.permute.xlu0 %314
        %316 = vset.pattern.permute.xlu0 0
        %317 = vperm.xlu0 %316, %v222
        %v318 = vpop.permute.xlu0 %317
        %319 = vset.pattern.permute.xlu0 0
        %320 = vperm.xlu0 %319, %v223
        %v321 = vpop.permute.xlu0 %320
        %vm322 = vcmp.eq.s32.totalorder %v225, %v228
        %vm323 = vcmp.eq.s32.totalorder %v225, %v231
        %vm324 = vcmp.eq.s32.totalorder %v225, %v234
        %vm325 = vcmp.eq.s32.totalorder %v225, %v237
        %vm326 = vcmp.eq.s32.totalorder %v225, %v240
        %vm327 = vcmp.eq.s32.totalorder %v225, %v243
        %vm328 = vcmp.eq.s32.totalorder %v225, %v246
        %vm329 = vcmp.eq.s32.totalorder %v225, %v249
        %vm330 = vcmp.eq.s32.totalorder %v225, %v252
        %vm331 = vcmp.eq.s32.totalorder %v225, %v255
        %vm332 = vcmp.eq.s32.totalorder %v225, %v258
        %vm333 = vcmp.eq.s32.totalorder %v225, %v261
        %vm334 = vcmp.eq.s32.totalorder %v225, %v264
        %vm335 = vcmp.eq.s32.totalorder %v225, %v267
        %vm336 = vcmp.eq.s32.totalorder %v225, %v270
        %vm337 = vcmp.eq.s32.totalorder %v225, %v273
        %vm338 = vcmp.eq.s32.totalorder %v225, %v276
        %vm339 = vcmp.eq.s32.totalorder %v225, %v279
        %vm340 = vcmp.eq.s32.totalorder %v225, %v282
        %vm341 = vcmp.eq.s32.totalorder %v225, %v285
        %vm342 = vcmp.eq.s32.totalorder %v225, %v288
        %vm343 = vcmp.eq.s32.totalorder %v225, %v291
        %vm344 = vcmp.eq.s32.totalorder %v225, %v294
        %vm345 = vcmp.eq.s32.totalorder %v225, %v297
        %vm346 = vcmp.eq.s32.totalorder %v225, %v300
        %vm347 = vcmp.eq.s32.totalorder %v225, %v303
        %vm348 = vcmp.eq.s32.totalorder %v225, %v306
        %vm349 = vcmp.eq.s32.totalorder %v225, %v309
        %vm350 = vcmp.eq.s32.totalorder %v225, %v312
        %vm351 = vcmp.eq.s32.totalorder %v225, %v315
        %vm352 = vcmp.eq.s32.totalorder %v225, %v318
        %vm353 = vcmp.eq.s32.totalorder %v225, %v321
        %v354 = vsel %vm322, 1, 0
        %v355 = vsel %vm323, 1, 0
        %v356 = vsel %vm324, 1, 0
        %v357 = vsel %vm325, 1, 0
        %v358 = vsel %vm326, 1, 0
        %v359 = vsel %vm327, 1, 0
        %v360 = vsel %vm328, 1, 0
        %v361 = vsel %vm329, 1, 0
        %v362 = vsel %vm330, 1, 0
        %v363 = vsel %vm331, 1, 0
        %v364 = vsel %vm332, 1, 0
        %v365 = vsel %vm333, 1, 0
        %v366 = vsel %vm334, 1, 0
        %v367 = vsel %vm335, 1, 0
        %v368 = vsel %vm336, 1, 0
        %v369 = vsel %vm337, 1, 0
        %v370 = vsel %vm338, 1, 0
        %v371 = vsel %vm339, 1, 0
        %v372 = vsel %vm340, 1, 0
        %v373 = vsel %vm341, 1, 0
        %v374 = vsel %vm342, 1, 0
        %v375 = vsel %vm343, 1, 0
        %v376 = vsel %vm344, 1, 0
        %v377 = vsel %vm345, 1, 0
        %v378 = vsel %vm346, 1, 0
        %v379 = vsel %vm347, 1, 0
        %v380 = vsel %vm348, 1, 0
        %v381 = vsel %vm349, 1, 0
        %v382 = vsel %vm350, 1, 0
        %v383 = vsel %vm351, 1, 0
        %v384 = vsel %vm352, 1, 0
        %v385 = vsel %vm353, 1, 0
        %v386 = vcvt.s32.f32 %v354
        %v387 = vcvt.s32.f32 %v355
        %v388 = vcvt.s32.f32 %v356
        %v389 = vcvt.s32.f32 %v357
        %v390 = vcvt.s32.f32 %v358
        %v391 = vcvt.s32.f32 %v359
        %v392 = vcvt.s32.f32 %v360
        %v393 = vcvt.s32.f32 %v361
        %v394 = vcvt.s32.f32 %v362
        %v395 = vcvt.s32.f32 %v363
        %v396 = vcvt.s32.f32 %v364
        %v397 = vcvt.s32.f32 %v365
        %v398 = vcvt.s32.f32 %v366
        %v399 = vcvt.s32.f32 %v367
        %v400 = vcvt.s32.f32 %v368
        %v401 = vcvt.s32.f32 %v369
        %v402 = vcvt.s32.f32 %v370
        %v403 = vcvt.s32.f32 %v371
        %v404 = vcvt.s32.f32 %v372
        %v405 = vcvt.s32.f32 %v373
        %v406 = vcvt.s32.f32 %v374
        %v407 = vcvt.s32.f32 %v375
        %v408 = vcvt.s32.f32 %v376
        %v409 = vcvt.s32.f32 %v377
        %v410 = vcvt.s32.f32 %v378
        %v411 = vcvt.s32.f32 %v379
        %v412 = vcvt.s32.f32 %v380
        %v413 = vcvt.s32.f32 %v381
        %v414 = vcvt.s32.f32 %v382
        %v415 = vcvt.s32.f32 %v383
        %v416 = vcvt.s32.f32 %v384
        %v417 = vcvt.s32.f32 %v385
        %418 = vmax.xlane.f32.xlu0 %v160
        %v419 = vpop.xlane.xlu0 %418
        %420 = vmax.xlane.f32.xlu0 %v161
        %v421 = vpop.xlane.xlu0 %420
        %422 = vmax.xlane.f32.xlu0 %v162
        %v423 = vpop.xlane.xlu0 %422
        %424 = vmax.xlane.f32.xlu0 %v163
        %v425 = vpop.xlane.xlu0 %424
        %426 = vmax.xlane.f32.xlu0 %v164
        %v427 = vpop.xlane.xlu0 %426
        %428 = vmax.xlane.f32.xlu0 %v165
        %v429 = vpop.xlane.xlu0 %428
        %430 = vmax.xlane.f32.xlu0 %v166
        %v431 = vpop.xlane.xlu0 %430
        %432 = vmax.xlane.f32.xlu0 %v167
        %v433 = vpop.xlane.xlu0 %432
        %434 = vmax.xlane.f32.xlu0 %v168
        %v435 = vpop.xlane.xlu0 %434
        %436 = vmax.xlane.f32.xlu0 %v169
        %v437 = vpop.xlane.xlu0 %436
        %438 = vmax.xlane.f32.xlu0 %v170
        %v439 = vpop.xlane.xlu0 %438
        %440 = vmax.xlane.f32.xlu0 %v171
        %v441 = vpop.xlane.xlu0 %440
        %442 = vmax.xlane.f32.xlu0 %v172
        %v443 = vpop.xlane.xlu0 %442
        %444 = vmax.xlane.f32.xlu0 %v173
        %v445 = vpop.xlane.xlu0 %444
        %446 = vmax.xlane.f32.xlu0 %v174
        %v447 = vpop.xlane.xlu0 %446
        %448 = vmax.xlane.f32.xlu0 %v175
        %v449 = vpop.xlane.xlu0 %448
        %450 = vmax.xlane.f32.xlu0 %v176
        %v451 = vpop.xlane.xlu0 %450
        %452 = vmax.xlane.f32.xlu0 %v177
        %v453 = vpop.xlane.xlu0 %452
        %454 = vmax.xlane.f32.xlu0 %v178
        %v455 = vpop.xlane.xlu0 %454
        %456 = vmax.xlane.f32.xlu0 %v179
        %v457 = vpop.xlane.xlu0 %456
        %458 = vmax.xlane.f32.xlu0 %v180
        %v459 = vpop.xlane.xlu0 %458
        %460 = vmax.xlane.f32.xlu0 %v181
        %v461 = vpop.xlane.xlu0 %460
        %462 = vmax.xlane.f32.xlu0 %v182
        %v463 = vpop.xlane.xlu0 %462
        %464 = vmax.xlane.f32.xlu0 %v183
        %v465 = vpop.xlane.xlu0 %464
        %466 = vmax.xlane.f32.xlu0 %v184
        %v467 = vpop.xlane.xlu0 %466
        %468 = vmax.xlane.f32.xlu0 %v185
        %v469 = vpop.xlane.xlu0 %468
        %470 = vmax.xlane.f32.xlu0 %v186
        %v471 = vpop.xlane.xlu0 %470
        %472 = vmax.xlane.f32.xlu0 %v187
        %v473 = vpop.xlane.xlu0 %472
        %474 = vmax.xlane.f32.xlu0 %v188
        %v475 = vpop.xlane.xlu0 %474
        %476 = vmax.xlane.f32.xlu0 %v189
        %v477 = vpop.xlane.xlu0 %476
        %478 = vmax.xlane.f32.xlu0 %v190
        %v479 = vpop.xlane.xlu0 %478
        %480 = vmax.xlane.f32.xlu0 %v191
        %v481 = vpop.xlane.xlu0 %480
        %v482 = vsub.f32 %v160, %v419
        %v483 = vsub.f32 %v161, %v421
        %v484 = vsub.f32 %v162, %v423
        %v485 = vsub.f32 %v163, %v425
        %v486 = vsub.f32 %v164, %v427
        %v487 = vsub.f32 %v165, %v429
        %v488 = vsub.f32 %v166, %v431
        %v489 = vsub.f32 %v167, %v433
        %v490 = vsub.f32 %v168, %v435
        %v491 = vsub.f32 %v169, %v437
        %v492 = vsub.f32 %v170, %v439
        %v493 = vsub.f32 %v171, %v441
        %v494 = vsub.f32 %v172, %v443
        %v495 = vsub.f32 %v173, %v445
        %v496 = vsub.f32 %v174, %v447
        %v497 = vsub.f32 %v175, %v449
        %v498 = vsub.f32 %v176, %v451
        %v499 = vsub.f32 %v177, %v453
        %v500 = vsub.f32 %v178, %v455
        %v501 = vsub.f32 %v179, %v457
        %v502 = vsub.f32 %v180, %v459
        %v503 = vsub.f32 %v181, %v461
        %v504 = vsub.f32 %v182, %v463
        %v505 = vsub.f32 %v183, %v465
        %v506 = vsub.f32 %v184, %v467
        %v507 = vsub.f32 %v185, %v469
        %v508 = vsub.f32 %v186, %v471
        %v509 = vsub.f32 %v187, %v473
        %v510 = vsub.f32 %v188, %v475
        %v511 = vsub.f32 %v189, %v477
        %v512 = vsub.f32 %v190, %v479
        %v513 = vsub.f32 %v191, %v481
        %v514 = vmul.f32 %v482, 1.442695
        %v515 = vpow.pop %v514
        %v516 = vmul.f32 %v483, 1.442695
        %v517 = vpow.pop %v516
        %v518 = vmul.f32 %v484, 1.442695
        %v519 = vpow.pop %v518
        %v520 = vmul.f32 %v485, 1.442695
        %v521 = vpow.pop %v520
        %v522 = vmul.f32 %v486, 1.442695
        %v523 = vpow.pop %v522
        %v524 = vmul.f32 %v487, 1.442695
        %v525 = vpow.pop %v524
        %v526 = vmul.f32 %v488, 1.442695
        %v527 = vpow.pop %v526
        %v528 = vmul.f32 %v489, 1.442695
        %v529 = vpow.pop %v528
        %v530 = vmul.f32 %v490, 1.442695
        %v531 = vpow.pop %v530
        %v532 = vmul.f32 %v491, 1.442695
        %v533 = vpow.pop %v532
        %v534 = vmul.f32 %v492, 1.442695
        %v535 = vpow.pop %v534
        %v536 = vmul.f32 %v493, 1.442695
        %v537 = vpow.pop %v536
        %v538 = vmul.f32 %v494, 1.442695
        %v539 = vpow.pop %v538
        %v540 = vmul.f32 %v495, 1.442695
        %v541 = vpow.pop %v540
        %v542 = vmul.f32 %v496, 1.442695
        %v543 = vpow.pop %v542
        %v544 = vmul.f32 %v497, 1.442695
        %v545 = vpow.pop %v544
        %v546 = vmul.f32 %v498, 1.442695
        %v547 = vpow.pop %v546
        %v548 = vmul.f32 %v499, 1.442695
        %v549 = vpow.pop %v548
        %v550 = vmul.f32 %v500, 1.442695
        %v551 = vpow.pop %v550
        %v552 = vmul.f32 %v501, 1.442695
        %v553 = vpow.pop %v552
        %v554 = vmul.f32 %v502, 1.442695
        %v555 = vpow.pop %v554
        %v556 = vmul.f32 %v503, 1.442695
        %v557 = vpow.pop %v556
        %v558 = vmul.f32 %v504, 1.442695
        %v559 = vpow.pop %v558
        %v560 = vmul.f32 %v505, 1.442695
        %v561 = vpow.pop %v560
        %v562 = vmul.f32 %v506, 1.442695
        %v563 = vpow.pop %v562
        %v564 = vmul.f32 %v507, 1.442695
        %v565 = vpow.pop %v564
        %v566 = vmul.f32 %v508, 1.442695
        %v567 = vpow.pop %v566
        %v568 = vmul.f32 %v509, 1.442695
        %v569 = vpow.pop %v568
        %v570 = vmul.f32 %v510, 1.442695
        %v571 = vpow.pop %v570
        %v572 = vmul.f32 %v511, 1.442695
        %v573 = vpow.pop %v572
        %v574 = vmul.f32 %v512, 1.442695
        %v575 = vpow.pop %v574
        %v576 = vmul.f32 %v513, 1.442695
        %v577 = vpow.pop %v576
        %578 = vadd.xlane.f32.xlu0 %v515
        %v579 = vpop.xlane.xlu0 %578
        %580 = vadd.xlane.f32.xlu0 %v517
        %v581 = vpop.xlane.xlu0 %580
        %582 = vadd.xlane.f32.xlu0 %v519
        %v583 = vpop.xlane.xlu0 %582
        %584 = vadd.xlane.f32.xlu0 %v521
        %v585 = vpop.xlane.xlu0 %584
        %586 = vadd.xlane.f32.xlu0 %v523
        %v587 = vpop.xlane.xlu0 %586
        %588 = vadd.xlane.f32.xlu0 %v525
        %v589 = vpop.xlane.xlu0 %588
        %590 = vadd.xlane.f32.xlu0 %v527
        %v591 = vpop.xlane.xlu0 %590
        %592 = vadd.xlane.f32.xlu0 %v529
        %v593 = vpop.xlane.xlu0 %592
        %594 = vadd.xlane.f32.xlu0 %v531
        %v595 = vpop.xlane.xlu0 %594
        %596 = vadd.xlane.f32.xlu0 %v533
        %v597 = vpop.xlane.xlu0 %596
        %598 = vadd.xlane.f32.xlu0 %v535
        %v599 = vpop.xlane.xlu0 %598
        %600 = vadd.xlane.f32.xlu0 %v537
        %v601 = vpop.xlane.xlu0 %600
        %602 = vadd.xlane.f32.xlu0 %v539
        %v603 = vpop.xlane.xlu0 %602
        %604 = vadd.xlane.f32.xlu0 %v541
        %v605 = vpop.xlane.xlu0 %604
        %606 = vadd.xlane.f32.xlu0 %v543
        %v607 = vpop.xlane.xlu0 %606
        %608 = vadd.xlane.f32.xlu0 %v545
        %v609 = vpop.xlane.xlu0 %608
        %610 = vadd.xlane.f32.xlu0 %v547
        %v611 = vpop.xlane.xlu0 %610
        %612 = vadd.xlane.f32.xlu0 %v549
        %v613 = vpop.xlane.xlu0 %612
        %614 = vadd.xlane.f32.xlu0 %v551
        %v615 = vpop.xlane.xlu0 %614
        %616 = vadd.xlane.f32.xlu0 %v553
        %v617 = vpop.xlane.xlu0 %616
        %618 = vadd.xlane.f32.xlu0 %v555
        %v619 = vpop.xlane.xlu0 %618
        %620 = vadd.xlane.f32.xlu0 %v557
        %v621 = vpop.xlane.xlu0 %620
        %622 = vadd.xlane.f32.xlu0 %v559
        %v623 = vpop.xlane.xlu0 %622
        %624 = vadd.xlane.f32.xlu0 %v561
        %v625 = vpop.xlane.xlu0 %624
        %626 = vadd.xlane.f32.xlu0 %v563
        %v627 = vpop.xlane.xlu0 %626
        %628 = vadd.xlane.f32.xlu0 %v565
        %v629 = vpop.xlane.xlu0 %628
        %630 = vadd.xlane.f32.xlu0 %v567
        %v631 = vpop.xlane.xlu0 %630
        %632 = vadd.xlane.f32.xlu0 %v569
        %v633 = vpop.xlane.xlu0 %632
        %634 = vadd.xlane.f32.xlu0 %v571
        %v635 = vpop.xlane.xlu0 %634
        %636 = vadd.xlane.f32.xlu0 %v573
        %v637 = vpop.xlane.xlu0 %636
        %638 = vadd.xlane.f32.xlu0 %v575
        %v639 = vpop.xlane.xlu0 %638
        %640 = vadd.xlane.f32.xlu0 %v577
        %v641 = vpop.xlane.xlu0 %640
        %v642 = vlog2.pop %v579
        %v643 = vmul.f32 %v642, 0.6931472
        %v644 = vlog2.pop %v581
        %v645 = vmul.f32 %v644, 0.6931472
        %v646 = vlog2.pop %v583
        %v647 = vmul.f32 %v646, 0.6931472
        %v648 = vlog2.pop %v585
        %v649 = vmul.f32 %v648, 0.6931472
        %v650 = vlog2.pop %v587
        %v651 = vmul.f32 %v650, 0.6931472
        %v652 = vlog2.pop %v589
        %v653 = vmul.f32 %v652, 0.6931472
        %v654 = vlog2.pop %v591
        %v655 = vmul.f32 %v654, 0.6931472
        %v656 = vlog2.pop %v593
        %v657 = vmul.f32 %v656, 0.6931472
        %v658 = vlog2.pop %v595
        %v659 = vmul.f32 %v658, 0.6931472
        %v660 = vlog2.pop %v597
        %v661 = vmul.f32 %v660, 0.6931472
        %v662 = vlog2.pop %v599
        %v663 = vmul.f32 %v662, 0.6931472
        %v664 = vlog2.pop %v601
        %v665 = vmul.f32 %v664, 0.6931472
        %v666 = vlog2.pop %v603
        %v667 = vmul.f32 %v666, 0.6931472
        %v668 = vlog2.pop %v605
        %v669 = vmul.f32 %v668, 0.6931472
        %v670 = vlog2.pop %v607
        %v671 = vmul.f32 %v670, 0.6931472
        %v672 = vlog2.pop %v609
        %v673 = vmul.f32 %v672, 0.6931472
        %v674 = vlog2.pop %v611
        %v675 = vmul.f32 %v674, 0.6931472
        %v676 = vlog2.pop %v613
        %v677 = vmul.f32 %v676, 0.6931472
        %v678 = vlog2.pop %v615
        %v679 = vmul.f32 %v678, 0.6931472
        %v680 = vlog2.pop %v617
        %v681 = vmul.f32 %v680, 0.6931472
        %v682 = vlog2.pop %v619
        %v683 = vmul.f32 %v682, 0.6931472
        %v684 = vlog2.pop %v621
        %v685 = vmul.f32 %v684, 0.6931472
        %v686 = vlog2.pop %v623
        %v687 = vmul.f32 %v686, 0.6931472
        %v688 = vlog2.pop %v625
        %v689 = vmul.f32 %v688, 0.6931472
        %v690 = vlog2.pop %v627
        %v691 = vmul.f32 %v690, 0.6931472
        %v692 = vlog2.pop %v629
        %v693 = vmul.f32 %v692, 0.6931472
        %v694 = vlog2.pop %v631
        %v695 = vmul.f32 %v694, 0.6931472
        %v696 = vlog2.pop %v633
        %v697 = vmul.f32 %v696, 0.6931472
        %v698 = vlog2.pop %v635
        %v699 = vmul.f32 %v698, 0.6931472
        %v700 = vlog2.pop %v637
        %v701 = vmul.f32 %v700, 0.6931472
        %v702 = vlog2.pop %v639
        %v703 = vmul.f32 %v702, 0.6931472
        %v704 = vlog2.pop %v641
        %v705 = vmul.f32 %v704, 0.6931472
        %v706 = vadd.f32 %v419, %v643
        %v707 = vadd.f32 %v421, %v645
        %v708 = vadd.f32 %v423, %v647
        %v709 = vadd.f32 %v425, %v649
        %v710 = vadd.f32 %v427, %v651
        %v711 = vadd.f32 %v429, %v653
        %v712 = vadd.f32 %v431, %v655
        %v713 = vadd.f32 %v433, %v657
        %v714 = vadd.f32 %v435, %v659
        %v715 = vadd.f32 %v437, %v661
        %v716 = vadd.f32 %v439, %v663
        %v717 = vadd.f32 %v441, %v665
        %v718 = vadd.f32 %v443, %v667
        %v719 = vadd.f32 %v445, %v669
        %v720 = vadd.f32 %v447, %v671
        %v721 = vadd.f32 %v449, %v673
        %v722 = vadd.f32 %v451, %v675
        %v723 = vadd.f32 %v453, %v677
        %v724 = vadd.f32 %v455, %v679
        %v725 = vadd.f32 %v457, %v681
        %v726 = vadd.f32 %v459, %v683
        %v727 = vadd.f32 %v461, %v685
        %v728 = vadd.f32 %v463, %v687
        %v729 = vadd.f32 %v465, %v689
        %v730 = vadd.f32 %v467, %v691
        %v731 = vadd.f32 %v469, %v693
        %v732 = vadd.f32 %v471, %v695
        %v733 = vadd.f32 %v473, %v697
        %v734 = vadd.f32 %v475, %v699
        %v735 = vadd.f32 %v477, %v701
        %v736 = vadd.f32 %v479, %v703
        %v737 = vadd.f32 %v481, %v705
        %v738 = vmul.f32 %v160, %v386
        %v739 = vmul.f32 %v161, %v387
        %v740 = vmul.f32 %v162, %v388
        %v741 = vmul.f32 %v163, %v389
        %v742 = vmul.f32 %v164, %v390
        %v743 = vmul.f32 %v165, %v391
        %v744 = vmul.f32 %v166, %v392
        %v745 = vmul.f32 %v167, %v393
        %v746 = vmul.f32 %v168, %v394
        %v747 = vmul.f32 %v169, %v395
        %v748 = vmul.f32 %v170, %v396
        %v749 = vmul.f32 %v171, %v397
        %v750 = vmul.f32 %v172, %v398
        %v751 = vmul.f32 %v173, %v399
        %v752 = vmul.f32 %v174, %v400
        %v753 = vmul.f32 %v175, %v401
        %v754 = vmul.f32 %v176, %v402
        %v755 = vmul.f32 %v177, %v403
        %v756 = vmul.f32 %v178, %v404
        %v757 = vmul.f32 %v179, %v405
        %v758 = vmul.f32 %v180, %v406
        %v759 = vmul.f32 %v181, %v407
        %v760 = vmul.f32 %v182, %v408
        %v761 = vmul.f32 %v183, %v409
        %v762 = vmul.f32 %v184, %v410
        %v763 = vmul.f32 %v185, %v411
        %v764 = vmul.f32 %v186, %v412
        %v765 = vmul.f32 %v187, %v413
        %v766 = vmul.f32 %v188, %v414
        %v767 = vmul.f32 %v189, %v415
        %v768 = vmul.f32 %v190, %v416
        %v769 = vmul.f32 %v191, %v417
        %770 = vadd.xlane.f32.xlu0 %v738
        %v771 = vpop.xlane.xlu0 %770
        %772 = vadd.xlane.f32.xlu0 %v739
        %v773 = vpop.xlane.xlu0 %772
        %774 = vadd.xlane.f32.xlu0 %v740
        %v775 = vpop.xlane.xlu0 %774
        %776 = vadd.xlane.f32.xlu0 %v741
        %v777 = vpop.xlane.xlu0 %776
        %778 = vadd.xlane.f32.xlu0 %v742
        %v779 = vpop.xlane.xlu0 %778
        %780 = vadd.xlane.f32.xlu0 %v743
        %v781 = vpop.xlane.xlu0 %780
        %782 = vadd.xlane.f32.xlu0 %v744
        %v783 = vpop.xlane.xlu0 %782
        %784 = vadd.xlane.f32.xlu0 %v745
        %v785 = vpop.xlane.xlu0 %784
        %786 = vadd.xlane.f32.xlu0 %v746
        %v787 = vpop.xlane.xlu0 %786
        %788 = vadd.xlane.f32.xlu0 %v747
        %v789 = vpop.xlane.xlu0 %788
        %790 = vadd.xlane.f32.xlu0 %v748
        %v791 = vpop.xlane.xlu0 %790
        %792 = vadd.xlane.f32.xlu0 %v749
        %v793 = vpop.xlane.xlu0 %792
        %794 = vadd.xlane.f32.xlu0 %v750
        %v795 = vpop.xlane.xlu0 %794
        %796 = vadd.xlane.f32.xlu0 %v751
        %v797 = vpop.xlane.xlu0 %796
        %798 = vadd.xlane.f32.xlu0 %v752
        %v799 = vpop.xlane.xlu0 %798
        %800 = vadd.xlane.f32.xlu0 %v753
        %v801 = vpop.xlane.xlu0 %800
        %802 = vadd.xlane.f32.xlu0 %v754
        %v803 = vpop.xlane.xlu0 %802
        %804 = vadd.xlane.f32.xlu0 %v755
        %v805 = vpop.xlane.xlu0 %804
        %806 = vadd.xlane.f32.xlu0 %v756
        %v807 = vpop.xlane.xlu0 %806
        %808 = vadd.xlane.f32.xlu0 %v757
        %v809 = vpop.xlane.xlu0 %808
        %810 = vadd.xlane.f32.xlu0 %v758
        %v811 = vpop.xlane.xlu0 %810
        %812 = vadd.xlane.f32.xlu0 %v759
        %v813 = vpop.xlane.xlu0 %812
        %814 = vadd.xlane.f32.xlu0 %v760
        %v815 = vpop.xlane.xlu0 %814
        %816 = vadd.xlane.f32.xlu0 %v761
        %v817 = vpop.xlane.xlu0 %816
        %818 = vadd.xlane.f32.xlu0 %v762
        %v819 = vpop.xlane.xlu0 %818
        %820 = vadd.xlane.f32.xlu0 %v763
        %v821 = vpop.xlane.xlu0 %820
        %822 = vadd.xlane.f32.xlu0 %v764
        %v823 = vpop.xlane.xlu0 %822
        %824 = vadd.xlane.f32.xlu0 %v765
        %v825 = vpop.xlane.xlu0 %824
        %826 = vadd.xlane.f32.xlu0 %v766
        %v827 = vpop.xlane.xlu0 %826
        %828 = vadd.xlane.f32.xlu0 %v767
        %v829 = vpop.xlane.xlu0 %828
        %830 = vadd.xlane.f32.xlu0 %v768
        %v831 = vpop.xlane.xlu0 %830
        %832 = vadd.xlane.f32.xlu0 %v769
        %v833 = vpop.xlane.xlu0 %832
        %v834 = vsub.f32 %v706, %v771
        %v835 = vsub.f32 %v707, %v773
        %v836 = vsub.f32 %v708, %v775
        %v837 = vsub.f32 %v709, %v777
        %v838 = vsub.f32 %v710, %v779
        %v839 = vsub.f32 %v711, %v781
        %v840 = vsub.f32 %v712, %v783
        %v841 = vsub.f32 %v713, %v785
        %v842 = vsub.f32 %v714, %v787
        %v843 = vsub.f32 %v715, %v789
        %v844 = vsub.f32 %v716, %v791
        %v845 = vsub.f32 %v717, %v793
        %v846 = vsub.f32 %v718, %v795
        %v847 = vsub.f32 %v719, %v797
        %v848 = vsub.f32 %v720, %v799
        %v849 = vsub.f32 %v721, %v801
        %v850 = vsub.f32 %v722, %v803
        %v851 = vsub.f32 %v723, %v805
        %v852 = vsub.f32 %v724, %v807
        %v853 = vsub.f32 %v725, %v809
        %v854 = vsub.f32 %v726, %v811
        %v855 = vsub.f32 %v727, %v813
        %v856 = vsub.f32 %v728, %v815
        %v857 = vsub.f32 %v729, %v817
        %v858 = vsub.f32 %v730, %v819
        %v859 = vsub.f32 %v731, %v821
        %v860 = vsub.f32 %v732, %v823
        %v861 = vsub.f32 %v733, %v825
        %v862 = vsub.f32 %v734, %v827
        %v863 = vsub.f32 %v735, %v829
        %v864 = vsub.f32 %v736, %v831
        %v865 = vsub.f32 %v737, %v833
        %v866 = vlaneseq
        %v867 = vshrl.u32 %v866, 7
        %v868 = vadd.s32 %v867, 8
        %v869 = vadd.s32 %v867, 16
        %v870 = vadd.s32 %v867, 24
        %v871 = vadd.s32 %v867, 32
        %v872 = vadd.s32 %v867, 40
        %v873 = vadd.s32 %v867, 48
        %v874 = vadd.s32 %v867, 56
        %v875 = vadd.s32 %v867, 64
        %v876 = vadd.s32 %v867, 72
        %v877 = vadd.s32 %v867, 80
        %v878 = vadd.s32 %v867, 88
        %v879 = vadd.s32 %v867, 96
        %v880 = vadd.s32 %v867, 104
        %v881 = vadd.s32 %v867, 112
        %v882 = vadd.s32 %v867, 120
        %v883 = vadd.s32 %v867, 128
        %v884 = vadd.s32 %v867, 136
        %v885 = vadd.s32 %v867, 144
        %v886 = vadd.s32 %v867, 152
        %v887 = vadd.s32 %v867, 160
        %v888 = vadd.s32 %v867, 168
        %v889 = vadd.s32 %v867, 176
        %v890 = vadd.s32 %v867, 184
        %v891 = vadd.s32 %v867, 192
        %v892 = vadd.s32 %v867, 200
        %v893 = vadd.s32 %v867, 208
        %v894 = vadd.s32 %v867, 216
        %v895 = vadd.s32 %v867, 224
        %v896 = vadd.s32 %v867, 232
        %v897 = vadd.s32 %v867, 240
        %v898 = vadd.s32 %v867, 248
        %s899 = smul.u32 %s14, 256
        %v900 = vstv %s899
        %v901 = vadd.s32 %v900, %v867
        %v902 = vadd.s32 %v900, %v868
        %v903 = vadd.s32 %v900, %v869
        %v904 = vadd.s32 %v900, %v870
        %v905 = vadd.s32 %v900, %v871
        %v906 = vadd.s32 %v900, %v872
        %v907 = vadd.s32 %v900, %v873
        %v908 = vadd.s32 %v900, %v874
        %v909 = vadd.s32 %v900, %v875
        %v910 = vadd.s32 %v900, %v876
        %v911 = vadd.s32 %v900, %v877
        %v912 = vadd.s32 %v900, %v878
        %v913 = vadd.s32 %v900, %v879
        %v914 = vadd.s32 %v900, %v880
        %v915 = vadd.s32 %v900, %v881
        %v916 = vadd.s32 %v900, %v882
        %v917 = vadd.s32 %v900, %v883
        %v918 = vadd.s32 %v900, %v884
        %v919 = vadd.s32 %v900, %v885
        %v920 = vadd.s32 %v900, %v886
        %v921 = vadd.s32 %v900, %v887
        %v922 = vadd.s32 %v900, %v888
        %v923 = vadd.s32 %v900, %v889
        %v924 = vadd.s32 %v900, %v890
        %v925 = vadd.s32 %v900, %v891
        %v926 = vadd.s32 %v900, %v892
        %v927 = vadd.s32 %v900, %v893
        %v928 = vadd.s32 %v900, %v894
        %v929 = vadd.s32 %v900, %v895
        %v930 = vadd.s32 %v900, %v896
        %v931 = vadd.s32 %v900, %v897
        %v932 = vadd.s32 %v900, %v898
        %vm933 = vcmp.lt.s32.totalorder %v901, 520
        %vm934 = vcmp.lt.s32.totalorder %v902, 520
        %vm935 = vcmp.lt.s32.totalorder %v903, 520
        %vm936 = vcmp.lt.s32.totalorder %v904, 520
        %vm937 = vcmp.lt.s32.totalorder %v905, 520
        %vm938 = vcmp.lt.s32.totalorder %v906, 520
        %vm939 = vcmp.lt.s32.totalorder %v907, 520
        %vm940 = vcmp.lt.s32.totalorder %v908, 520
        %vm941 = vcmp.lt.s32.totalorder %v909, 520
        %vm942 = vcmp.lt.s32.totalorder %v910, 520
        %vm943 = vcmp.lt.s32.totalorder %v911, 520
        %vm944 = vcmp.lt.s32.totalorder %v912, 520
        %vm945 = vcmp.lt.s32.totalorder %v913, 520
        %vm946 = vcmp.lt.s32.totalorder %v914, 520
        %vm947 = vcmp.lt.s32.totalorder %v915, 520
        %vm948 = vcmp.lt.s32.totalorder %v916, 520
        %vm949 = vcmp.lt.s32.totalorder %v917, 520
        %vm950 = vcmp.lt.s32.totalorder %v918, 520
        %vm951 = vcmp.lt.s32.totalorder %v919, 520
        %vm952 = vcmp.lt.s32.totalorder %v920, 520
        %vm953 = vcmp.lt.s32.totalorder %v921, 520
        %vm954 = vcmp.lt.s32.totalorder %v922, 520
        %vm955 = vcmp.lt.s32.totalorder %v923, 520
        %vm956 = vcmp.lt.s32.totalorder %v924, 520
        %vm957 = vcmp.lt.s32.totalorder %v925, 520
        %vm958 = vcmp.lt.s32.totalorder %v926, 520
        %vm959 = vcmp.lt.s32.totalorder %v927, 520
        %vm960 = vcmp.lt.s32.totalorder %v928, 520
        %vm961 = vcmp.lt.s32.totalorder %v929, 520
        %vm962 = vcmp.lt.s32.totalorder %v930, 520
        %vm963 = vcmp.lt.s32.totalorder %v931, 520
        %vm964 = vcmp.lt.s32.totalorder %v932, 520
        %v965 = vsel %vm933, 1, 0
        %v966 = vsel %vm934, 1, 0
        %v967 = vsel %vm935, 1, 0
        %v968 = vsel %vm936, 1, 0
        %v969 = vsel %vm937, 1, 0
        %v970 = vsel %vm938, 1, 0
        %v971 = vsel %vm939, 1, 0
        %v972 = vsel %vm940, 1, 0
        %v973 = vsel %vm941, 1, 0
        %v974 = vsel %vm942, 1, 0
        %v975 = vsel %vm943, 1, 0
        %v976 = vsel %vm944, 1, 0
        %v977 = vsel %vm945, 1, 0
        %v978 = vsel %vm946, 1, 0
        %v979 = vsel %vm947, 1, 0
        %v980 = vsel %vm948, 1, 0
        %v981 = vsel %vm949, 1, 0
        %v982 = vsel %vm950, 1, 0
        %v983 = vsel %vm951, 1, 0
        %v984 = vsel %vm952, 1, 0
        %v985 = vsel %vm953, 1, 0
        %v986 = vsel %vm954, 1, 0
        %v987 = vsel %vm955, 1, 0
        %v988 = vsel %vm956, 1, 0
        %v989 = vsel %vm957, 1, 0
        %v990 = vsel %vm958, 1, 0
        %v991 = vsel %vm959, 1, 0
        %v992 = vsel %vm960, 1, 0
        %v993 = vsel %vm961, 1, 0
        %v994 = vsel %vm962, 1, 0
        %v995 = vsel %vm963, 1, 0
        %v996 = vsel %vm964, 1, 0
        %v997 = vcvt.s32.f32 %v965
        %v998 = vcvt.s32.f32 %v966
        %v999 = vcvt.s32.f32 %v967
        %v1000 = vcvt.s32.f32 %v968
        %v1001 = vcvt.s32.f32 %v969
        %v1002 = vcvt.s32.f32 %v970
        %v1003 = vcvt.s32.f32 %v971
        %v1004 = vcvt.s32.f32 %v972
        %v1005 = vcvt.s32.f32 %v973
        %v1006 = vcvt.s32.f32 %v974
        %v1007 = vcvt.s32.f32 %v975
        %v1008 = vcvt.s32.f32 %v976
        %v1009 = vcvt.s32.f32 %v977
        %v1010 = vcvt.s32.f32 %v978
        %v1011 = vcvt.s32.f32 %v979
        %v1012 = vcvt.s32.f32 %v980
        %v1013 = vcvt.s32.f32 %v981
        %v1014 = vcvt.s32.f32 %v982
        %v1015 = vcvt.s32.f32 %v983
        %v1016 = vcvt.s32.f32 %v984
        %v1017 = vcvt.s32.f32 %v985
        %v1018 = vcvt.s32.f32 %v986
        %v1019 = vcvt.s32.f32 %v987
        %v1020 = vcvt.s32.f32 %v988
        %v1021 = vcvt.s32.f32 %v989
        %v1022 = vcvt.s32.f32 %v990
        %v1023 = vcvt.s32.f32 %v991
        %v1024 = vcvt.s32.f32 %v992
        %v1025 = vcvt.s32.f32 %v993
        %v1026 = vcvt.s32.f32 %v994
        %v1027 = vcvt.s32.f32 %v995
        %v1028 = vcvt.s32.f32 %v996
        %v1029 = vld [vmem:[#allocation2] sm:$0x1]
        %v1030 = vmul.f32 %v834, %v997
        %v1031 = vmul.f32 %v835, %v998
        %v1032 = vmul.f32 %v836, %v999
        %v1033 = vmul.f32 %v837, %v1000
        %v1034 = vmul.f32 %v838, %v1001
        %v1035 = vmul.f32 %v839, %v1002
        %v1036 = vmul.f32 %v840, %v1003
        %v1037 = vmul.f32 %v841, %v1004
        %v1038 = vmul.f32 %v842, %v1005
        %v1039 = vmul.f32 %v843, %v1006
        %v1040 = vmul.f32 %v844, %v1007
        %v1041 = vmul.f32 %v845, %v1008
        %v1042 = vmul.f32 %v846, %v1009
        %v1043 = vmul.f32 %v847, %v1010
        %v1044 = vmul.f32 %v848, %v1011
        %v1045 = vmul.f32 %v849, %v1012
        %v1046 = vmul.f32 %v850, %v1013
        %v1047 = vmul.f32 %v851, %v1014
        %v1048 = vmul.f32 %v852, %v1015
        %v1049 = vmul.f32 %v853, %v1016
        %v1050 = vmul.f32 %v854, %v1017
        %v1051 = vmul.f32 %v855, %v1018
        %v1052 = vmul.f32 %v856, %v1019
        %v1053 = vmul.f32 %v857, %v1020
        %v1054 = vmul.f32 %v858, %v1021
        %v1055 = vmul.f32 %v859, %v1022
        %v1056 = vmul.f32 %v860, %v1023
        %v1057 = vmul.f32 %v861, %v1024
        %v1058 = vmul.f32 %v862, %v1025
        %v1059 = vmul.f32 %v863, %v1026
        %v1060 = vmul.f32 %v864, %v1027
        %v1061 = vmul.f32 %v865, %v1028
        %vm1062 = vcmask 7168
        %v1063 = vsel %vm1062, %v1030, 0.0
        %v1064 = vsel %vm1062, %v1031, 0.0
        %v1065 = vadd.f32 %v1063, %v1064
        %v1066 = vsel %vm1062, %v1032, 0.0
        %v1067 = vadd.f32 %v1065, %v1066
        %v1068 = vsel %vm1062, %v1033, 0.0
        %v1069 = vadd.f32 %v1067, %v1068
        %v1070 = vsel %vm1062, %v1034, 0.0
        %v1071 = vadd.f32 %v1069, %v1070
        %v1072 = vsel %vm1062, %v1035, 0.0
        %v1073 = vadd.f32 %v1071, %v1072
        %v1074 = vsel %vm1062, %v1036, 0.0
        %v1075 = vadd.f32 %v1073, %v1074
        %v1076 = vsel %vm1062, %v1037, 0.0
        %v1077 = vadd.f32 %v1075, %v1076
        %v1078 = vsel %vm1062, %v1038, 0.0
        %v1079 = vadd.f32 %v1077, %v1078
        %v1080 = vsel %vm1062, %v1039, 0.0
        %v1081 = vadd.f32 %v1079, %v1080
        %v1082 = vsel %vm1062, %v1040, 0.0
        %v1083 = vadd.f32 %v1081, %v1082
        %v1084 = vsel %vm1062, %v1041, 0.0
        %v1085 = vadd.f32 %v1083, %v1084
        %v1086 = vsel %vm1062, %v1042, 0.0
        %v1087 = vadd.f32 %v1085, %v1086
        %v1088 = vsel %vm1062, %v1043, 0.0
        %v1089 = vadd.f32 %v1087, %v1088
        %v1090 = vsel %vm1062, %v1044, 0.0
        %v1091 = vadd.f32 %v1089, %v1090
        %v1092 = vsel %vm1062, %v1045, 0.0
        %v1093 = vadd.f32 %v1091, %v1092
        %v1094 = vsel %vm1062, %v1046, 0.0
        %v1095 = vadd.f32 %v1093, %v1094
        %v1096 = vsel %vm1062, %v1047, 0.0
        %v1097 = vadd.f32 %v1095, %v1096
        %v1098 = vsel %vm1062, %v1048, 0.0
        %v1099 = vadd.f32 %v1097, %v1098
        %v1100 = vsel %vm1062, %v1049, 0.0
        %v1101 = vadd.f32 %v1099, %v1100
        %v1102 = vsel %vm1062, %v1050, 0.0
        %v1103 = vadd.f32 %v1101, %v1102
        %v1104 = vsel %vm1062, %v1051, 0.0
        %v1105 = vadd.f32 %v1103, %v1104
        %v1106 = vsel %vm1062, %v1052, 0.0
        %v1107 = vadd.f32 %v1105, %v1106
        %v1108 = vsel %vm1062, %v1053, 0.0
        %v1109 = vadd.f32 %v1107, %v1108
        %v1110 = vsel %vm1062, %v1054, 0.0
        %v1111 = vadd.f32 %v1109, %v1110
        %v1112 = vsel %vm1062, %v1055, 0.0
        %v1113 = vadd.f32 %v1111, %v1112
        %v1114 = vsel %vm1062, %v1056, 0.0
        %v1115 = vadd.f32 %v1113, %v1114
        %v1116 = vsel %vm1062, %v1057, 0.0
        %v1117 = vadd.f32 %v1115, %v1116
        %v1118 = vsel %vm1062, %v1058, 0.0
        %v1119 = vadd.f32 %v1117, %v1118
        %v1120 = vsel %vm1062, %v1059, 0.0
        %v1121 = vadd.f32 %v1119, %v1120
        %v1122 = vsel %vm1062, %v1060, 0.0
        %v1123 = vadd.f32 %v1121, %v1122
        %v1124 = vsel %vm1062, %v1061, 0.0
        %v1125 = vadd.f32 %v1123, %v1124
        %1126 = vadd.xlane.f32.xlu0 %v1125
        %v1127 = vpop.xlane.xlu0 %1126
        %v1128 = vrot.slane %v1127, 4
        %v1129 = vadd.f32 %v1127, %v1128
        %v1130 = vrot.slane %v1129, 2
        %v1131 = vadd.f32 %v1129, %v1130
        %v1132 = vrot.slane %v1131, 1
        %v1133 = vadd.f32 %v1131, %v1132
        %s1134 = vtos %v1133
        %v1135 = vstv %s1134
        %v1136 = vadd.f32 %v1029, %v1135
        %vm1137 = vcmask 0
        %1138 = vst.msk [vmem:[#allocation2] sm:$0x1] %vm1137, %v1136
        %p1139 = scmp.eq.s32.totalorder %s14, 2
        // Predicated region
        $region33: #{tpu_custom_call.1} parent=27 // pred_check
          %p1140 = pneg %p1139
        $region34: #{tpu_custom_call.1} parent=27 // pred_check_branch
          %1142 = sbr.rel (%p1140) target = $region36
        $region35: #{tpu_custom_call.1} parent=27 // pred_region
          %v1143 = vld [vmem:[#allocation2] sm:$0x1]
          %v1144 = vrcp.pop 520.0
          %v1145 = vmul.f32 %v1143, %v1144
          %1146 = vst.msk [vmem:[#allocation2] sm:$0x1] %vm1137, %v1145
        $region36: #{tpu_custom_call.1} parent=27 // pred_fallthru
          _
        // Predicated region
        $region37: #{tpu_custom_call.1} parent=27 // pred_check
          %p1147 = pneg %p79
        $region38: #{tpu_custom_call.1} parent=27 // pred_check_branch
          %1149 = sbr.rel (%p1147) target = $region40
        $region39: #{tpu_custom_call.1} parent=27 // pred_region
          %s1151 = ssub.s32 16, 16
          %1152 = vsyncadd [#allocation3], %s1151
          %s1154 = sshll.u32 [#allocation2], 4
          %s1155 = int_to_ptr.vmem [resolvable:$true] %s1154
          %1157 = dma.vmem_to_hbm [thread:$0]  %s1155, 16, %s2, [#allocation3]
        $region40: #{tpu_custom_call.1} parent=27 // pred_fallthru
          _
        // Predicated region
        $region41: #{tpu_custom_call.1} parent=27 // pred_check
          %p1158 = pneg %p79
        $region42: #{tpu_custom_call.1} parent=27 // pred_check_branch
          %1160 = sbr.rel (%p1158) target = $region44
        $region43: #{tpu_custom_call.1} parent=27 // pred_region
          %1161 = dma.done [#allocation3], 16
        $region44: #{tpu_custom_call.1} parent=27 // pred_fallthru
          _
      $region28: #{tpu_custom_call.1} parent=5 // pred_fallthru
        _
      %p1162 = scmp.le.s32.totalorder 2, %s9
      // Predicated region
      $region45: #{tpu_custom_call.1} parent=5 // pred_check
        %p1163 = pneg %p1162
      $region46: #{tpu_custom_call.1} parent=5 // pred_check_branch
        %1165 = sbr.rel (%p1163) target = $region48
      $region47: #{tpu_custom_call.1} parent=5 // pred_region
        %s1166 = ssub.s32 %s9, 2
      $region48: #{tpu_custom_call.1} parent=5 // pred_fallthru
        _
    $region6: #{tpu_custom_call.1} parent=1 // loop_footer
      %s13 = sadd.s32 1, %s9
    $region7: #{tpu_custom_call.1} parent=1 // loop_footer_branch
      %8 = sbr.rel target = $region3
    $region8: #{tpu_custom_call.1} parent=1 // loop_exit
      _
    %1167 = vsyncpa [#allocation3], 1
    %s1168 = scalar_lea.sflag [#allocation3], 1
    %1169 = vsyncpa %s1168, 1

</llo_original>
